<compile_context>
chip_gen: v7x
topology: tpu7x:2x2x1
jax: 0.10.0
libtpu: 0.0.40
codegen_flags: <defaults>
</compile_context>

<pallas_src>
import functools

import jax
import jax.numpy as jnp
import numpy as np
from jax import lax
from jax.experimental import pallas as pl
from jax.experimental.pallas import tpu as pltpu


NUM_CORES = 2            # v7x has 2 TensorCores; on v5e/v6e this is just a serial split
TARGET_TILE_ROWS = 2048  # 2048 x 128 f32 = 1 MiB per input block (double-buffered)


def _round_up(n, m):
    return ((n + m - 1) // m) * m


def _as_rows128(x, row_multiple=32):
    """Flatten (native dtype) and view as (rows, 128) with rows % row_multiple == 0.

    Pads with zeros ONLY if the element count is not already a multiple of
    128 * row_multiple -- for production image shapes (e.g. Bx3x256x256) this is
    a no-op, so no extra HBM traffic is generated for the large tensors.
    """
    flat = x.reshape(-1)
    n = flat.shape[0]
    chunk = 128 * row_multiple
    n_pad = _round_up(n, chunk)
    if n_pad != n:
        flat = jnp.pad(flat, (0, n_pad - n))
    return flat.reshape(n_pad // 128, 128), n


def _l1_partial(gen_ref, lab_ref, l1_out_ref, *, rows_valid, tile_rows,
                tiles_per_core, need_mask):
    """Accumulate sum(|gen - lab|) for the current tile into l1_out_ref (8,128)."""
    g = gen_ref[...].astype(jnp.float32)
    t = lab_ref[...].astype(jnp.float32)
    d = jnp.abs(g - t)
    if need_mask:
        # Mask rows past the end of the real data: covers both the Pallas
        # boundary block (rows % tile_rows != 0 -> garbage past the array) and
        # overhang blocks from the clamped index_map (would double-count).
        blk = pl.program_id(0) * tiles_per_core + pl.program_id(1)
        row = blk * tile_rows + lax.broadcasted_iota(jnp.int32, d.shape, 0)
        d = jnp.where(row < rows_valid, d, 0.0)
    # Pure VPU adds over (8,128) vregs; hidden under the input DMAs.
    l1_out_ref[...] += d.reshape(tile_rows // 8, 8, 128).sum(axis=0)


def _kernel_baseline(gen_ref, lab_ref, l1_out_ref, *, rows_valid, tile_rows,
                     tiles_per_core, need_mask):
    @pl.when(pl.program_id(1) == 0)
    def _init():
        l1_out_ref[...] = jnp.zeros_like(l1_out_ref)

    _l1_partial(gen_ref, lab_ref, l1_out_ref, rows_valid=rows_valid,
                tile_rows=tile_rows, tiles_per_core=tiles_per_core,
                need_mask=need_mask)


def _kernel_full(gen_ref, lab_ref, disc_ref, l1_out_ref, bce_out_ref, *,
                 n_disc, rows_valid, tile_rows, tiles_per_core, need_mask):
    c = pl.program_id(0)
    k = pl.program_id(1)

    @pl.when(k == 0)
    def _init():
        l1_out_ref[...] = jnp.zeros_like(l1_out_ref)
        bce_out_ref[...] = jnp.zeros_like(bce_out_ref)

        # BCE-with-logits vs an all-ones target == softplus(-x), numerically
        # stable form. Computed once, on core 0 only (PatchGAN grid is small
        # and kept resident in VMEM).
        # TODO(synk): if the discriminator output were large, tile it along
        # the streaming axis instead of keeping it resident.
        @pl.when(c == 0)
        def _bce():
            x = disc_ref[...].astype(jnp.float32)
            bce = jnp.maximum(x, 0.0) - x + jnp.log1p(jnp.exp(-jnp.abs(x)))
            r = lax.broadcasted_iota(jnp.int32, x.shape, 0)
            l = lax.broadcasted_iota(jnp.int32, x.shape, 1)
            # Padded disc elements are 0 -> softplus(0) != 0, so always mask.
            bce = jnp.where(r * 128 + l < n_disc, bce, 0.0)
            dr = x.shape[0]
            bce_out_ref[...] = bce.reshape(dr // 8, 8, 128).sum(axis=0)

    _l1_partial(gen_ref, lab_ref, l1_out_ref, rows_valid=rows_valid,
                tile_rows=tile_rows, tiles_per_core=tiles_per_core,
                need_mask=need_mask)


def generator_loss(disc_generator_result, generated_image, label,
                   lambda_=250.0, baseline_model=True):
    gen2d, n_img = _as_rows128(generated_image)
    lab2d, n_lab = _as_rows128(label)
    assert n_img == n_lab and gen2d.shape == lab2d.shape

    rows = gen2d.shape[0]                            # multiple of 32
    tile_rows = min(TARGET_TILE_ROWS, rows)
    total_tiles = pl.cdiv(rows, tile_rows)
    num_cores = NUM_CORES if total_tiles >= NUM_CORES else 1
    tiles_per_core = pl.cdiv(total_tiles, num_cores)

    has_overhang = num_cores * tiles_per_core != total_tiles
    ragged_tail = (rows % tile_rows) != 0
    # Zero-padded rows from _as_rows128 contribute |0-0| = 0, so the row mask is
    # only needed for Pallas boundary blocks or clamped overhang blocks.
    need_mask = has_overhang or ragged_tail

    if has_overhang:
        def img_map(c, k):
            # Clamp so overhang blocks (fully masked to zero in-kernel) stay in bounds.
            return (jnp.minimum(c * tiles_per_core + k, total_tiles - 1), 0)
    else:
        def img_map(c, k):
            return (c * tiles_per_core + k, 0)

    common = dict(rows_valid=int(rows), tile_rows=int(tile_rows),
                  tiles_per_core=int(tiles_per_core), need_mask=bool(need_mask))

    img_spec = pl.BlockSpec((tile_rows, 128), img_map)
    out_spec = pl.BlockSpec((None, 8, 128), lambda c, k: (c, 0, 0))
    out_block = jax.ShapeDtypeStruct((num_cores, 8, 128), jnp.float32)
    compiler_params = pltpu.CompilerParams(
        dimension_semantics=("parallel", "arbitrary"))
    # VMEM footprint (2 inputs x 2 buffers x <=1 MiB + small resident disc +
    # per-core (8,128) outputs) is well under the default scoped-VMEM limit on
    # v5e/v6e/v7x; no vmem_limit_bytes override needed.

    if baseline_model:
        l1_part = pl.pallas_call(
            functools.partial(_kernel_baseline, **common),
            out_shape=out_block,
            grid_spec=pltpu.PrefetchScalarGridSpec(
                num_scalar_prefetch=0,
                grid=(num_cores, tiles_per_core),
                in_specs=[img_spec, img_spec],
                out_specs=out_spec),
            compiler_params=compiler_params,
        )(gen2d, lab2d)
        l1_loss = jnp.sum(l1_part) / jnp.float32(n_img)
        return jnp.float32(lambda_) * l1_loss

    disc2d, n_disc = _as_rows128(disc_generator_result)
    disc_rows = disc2d.shape[0]

    l1_part, bce_part = pl.pallas_call(
        functools.partial(_kernel_full, n_disc=int(n_disc), **common),
        out_shape=(out_block, out_block),
        grid_spec=pltpu.PrefetchScalarGridSpec(
            num_scalar_prefetch=0,
            grid=(num_cores, tiles_per_core),
            in_specs=[
                img_spec,                                             # generated image
                img_spec,                                             # label
                pl.BlockSpec((disc_rows, 128), lambda c, k: (0, 0)),  # disc logits (resident)
            ],
            out_specs=[out_spec, out_spec]),
        compiler_params=compiler_params,
    )(gen2d, lab2d, disc2d)

    # Tiny final reduction + normalization in plain JAX (<= 2*2*8*128 elements).
    l1_loss = jnp.sum(l1_part) / jnp.float32(n_img)
    gan_loss = jnp.sum(bce_part) / jnp.float32(n_disc)
    return gan_loss + jnp.float32(lambda_) * l1_loss


def _reference_loss(disc_res, gen_img, label, lambda_=250.0, baseline_model=True):
    l1 = jnp.mean(jnp.abs(gen_img.astype(jnp.float32) - label.astype(jnp.float32)))
    if baseline_model:
        return lambda_ * l1
    x = disc_res.astype(jnp.float32)
    gan = jnp.mean(jnp.maximum(x, 0.0) - x + jnp.log1p(jnp.exp(-jnp.abs(x))))
    return gan + lambda_ * l1


if __name__ == "__main__":
    key = jax.random.PRNGKey(0)
    k1, k2, k3 = jax.random.split(key, 3)

    # Small shapes consistent with the module's forward:
    #   generated_image / label: [batch, 3, H, W]   (here 2x3x16x16)
    #   disc_generator_result:   PatchGAN logits    (here 2x1x8x8)
    generated_image = jax.random.normal(k1, (2, 3, 16, 16), dtype=jnp.float32)
    label = jax.random.normal(k2, (2, 3, 16, 16), dtype=jnp.float32)
    disc_generator_result = jax.random.normal(k3, (2, 1, 8, 8), dtype=jnp.float32)

    ok = True
    for baseline in (True, False):   # module default is baseline_model=True
        out = generator_loss(disc_generator_result, generated_image, label,
                             lambda_=250.0, baseline_model=baseline)
        out = jax.block_until_ready(out)
        ref = _reference_loss(disc_generator_result, generated_image, label,
                              lambda_=250.0, baseline_model=baseline)
        ok = ok and bool(np.allclose(np.asarray(out), np.asarray(ref),
                                     rtol=1e-5, atol=1e-5))

    if ok:
        print("KERNEL_OK")
</pallas_src>

<mosaic_0001>
module attributes {stable_mosaic.version = 11 : i64} {
  func.func @_kernel_baseline(%arg0: i32, %arg1: i32, %arg2: memref<32x128xf32, #tpu.memory_space<vmem>>, %arg3: memref<32x128xf32, #tpu.memory_space<vmem>>, %arg4: memref<1x8x128xf32, #tpu.memory_space<vmem>>) attributes {dimension_semantics = [#tpu.dimension_semantics<parallel>, #tpu.dimension_semantics<arbitrary>], iteration_bounds = array<i64: 1, 1>, scalar_prefetch = 0 : i64, scratch_operands = 0 : i64, tpu.core_type = #tpu.core_type<tc>, window_params = [{transform_indices = @transform_0, window_bounds = array<i64: 32, 128>}, {transform_indices = @transform_1, window_bounds = array<i64: 32, 128>}, {transform_indices = @transform_2, window_bounds = array<i64: 1, 8, 128>}]} {
    %c0_i32 = arith.constant 0 : i32
    %0 = arith.cmpi eq, %arg1, %c0_i32 : i32
    %1 = arith.extui %0 : i1 to i32
    %c0_i32_0 = arith.constant 0 : i32
    %2 = arith.cmpi ne, %1, %c0_i32_0 : i32
    scf.if %2 {
      %cst_10 = arith.constant 0.000000e+00 : f32
      %15 = vector.broadcast %cst_10 : f32 to vector<8x128xf32>
      %c0_11 = arith.constant 0 : index
      %c0_12 = arith.constant 0 : index
      %c0_13 = arith.constant 0 : index
      %16 = vector.load %arg4[%c0_11, %c0_12, %c0_13] : memref<1x8x128xf32, #tpu.memory_space<vmem>>, vector<1x8x128xf32>
      %17 = vector.shape_cast %16 : vector<1x8x128xf32> to vector<8x128xf32>
      %18 = vector.shape_cast %15 : vector<8x128xf32> to vector<1x8x128xf32>
      tpu.vector_store %arg4[%c0_11, %c0_12, %c0_13], %18 {strides = array<i32>} : memref<1x8x128xf32, #tpu.memory_space<vmem>>, vector<1x8x128xf32>,
    } else {
    }
    %c0 = arith.constant 0 : index
    %c0_1 = arith.constant 0 : index
    %3 = vector.load %arg2[%c0, %c0_1] : memref<32x128xf32, #tpu.memory_space<vmem>>, vector<32x128xf32>
    %c0_2 = arith.constant 0 : index
    %c0_3 = arith.constant 0 : index
    %4 = vector.load %arg3[%c0_2, %c0_3] : memref<32x128xf32, #tpu.memory_space<vmem>>, vector<32x128xf32>
    %5 = arith.subf %3, %4 : vector<32x128xf32>
    %6 = math.absf %5 : vector<32x128xf32>
    %c0_4 = arith.constant 0 : index
    %c0_5 = arith.constant 0 : index
    %c0_6 = arith.constant 0 : index
    %7 = vector.load %arg4[%c0_4, %c0_5, %c0_6] : memref<1x8x128xf32, #tpu.memory_space<vmem>>, vector<1x8x128xf32>
    %8 = vector.shape_cast %7 : vector<1x8x128xf32> to vector<8x128xf32>
    %9 = vector.shape_cast %6 : vector<32x128xf32> to vector<4x8x128xf32>
    %cst = arith.constant dense<0.000000e+00> : vector<8x128xf32>
    %10 = vector.multi_reduction <add>, %9, %cst [0] : vector<4x8x128xf32> to vector<8x128xf32>
    %11 = arith.addf %8, %10 : vector<8x128xf32>
    %c0_7 = arith.constant 0 : index
    %c0_8 = arith.constant 0 : index
    %c0_9 = arith.constant 0 : index
    %12 = vector.load %arg4[%c0_7, %c0_8, %c0_9] : memref<1x8x128xf32, #tpu.memory_space<vmem>>, vector<1x8x128xf32>
    %13 = vector.shape_cast %12 : vector<1x8x128xf32> to vector<8x128xf32>
    %14 = vector.shape_cast %11 : vector<8x128xf32> to vector<1x8x128xf32>
    tpu.vector_store %arg4[%c0_7, %c0_8, %c0_9], %14 {strides = array<i32>} : memref<1x8x128xf32, #tpu.memory_space<vmem>>, vector<1x8x128xf32>,
    return
  }
  func.func @transform_0(%arg0: i32, %arg1: i32) -> (i32, i32) {
    %c1_i32 = arith.constant 1 : i32
    %0 = arith.muli %arg0, %c1_i32 : i32
    %1 = arith.addi %0, %arg1 : i32
    %c0_i32 = arith.constant 0 : i32
    %c0_i32_0 = arith.constant 0 : i32
    return %1, %c0_i32 : i32, i32
  }
  func.func @transform_1(%arg0: i32, %arg1: i32) -> (i32, i32) {
    %c1_i32 = arith.constant 1 : i32
    %0 = arith.muli %arg0, %c1_i32 : i32
    %1 = arith.addi %0, %arg1 : i32
    %c0_i32 = arith.constant 0 : i32
    %c0_i32_0 = arith.constant 0 : i32
    return %1, %c0_i32 : i32, i32
  }
  func.func @transform_2(%arg0: i32, %arg1: i32) -> (i32, i32, i32) {
    %c0_i32 = arith.constant 0 : i32
    %c0_i32_0 = arith.constant 0 : i32
    %c0_i32_1 = arith.constant 0 : i32
    return %arg0, %c0_i32, %c0_i32_0 : i32, i32, i32
  }
}

</mosaic_0001>

<llo_original>
// kernel: tpu_custom_call.1
$region0: #{tpu_custom_call.1}
  #allocation0 [shape = 'u32[]', space=smem, size = 0x4, offset = 0x4, fixed_abs, tag = 'smem constant byte address 0x4 - core index']
  #allocation1 [shape = 'u32[144,128]{1,0:T(1,128)}', space=vmem, size = 0x12000, scoped, tag = 'internal scratch']
  %s0 = inlined_call_operand.hbm [shape: f32[32,128], index: 0, kind: input, shape index: {}]
  %s1 = inlined_call_operand.hbm [shape: f32[32,128], index: 1, kind: input, shape index: {}]
  %s2 = inlined_call_operand.hbm [shape: f32[1,8,128], index: 2, kind: output, shape index: {}]
  %s3 = sld [smem:[#allocation0]]
  $region30: #{tpu_custom_call.1} parent=0
    _
  %s5 = ssub.s32 1, %s3
  %s6 = scalar_select 0, %s5, %s3
  $region1: #{tpu_custom_call.1} parent=0
    #allocation2 [shape = 'u8[16384]{0}', space=vmem, size = 0x4000, scoped, tag = 'input window, operand 0, single buffered']
    #allocation3 [shape = 's32[1]{0}', space=sflag, size = 0x4, scoped, tag = 'scoped memory for tpu_custom_call.1']
    #allocation4 [shape = 's32[1]{0}', space=sflag, size = 0x4, scoped, tag = 'scoped memory for tpu_custom_call.1']
    #allocation5 [shape = 'u8[16384]{0}', space=vmem, size = 0x4000, scoped, tag = 'input window, operand 1, single buffered']
    #allocation6 [shape = 's32[1]{0}', space=sflag, size = 0x4, scoped, tag = 'scoped memory for tpu_custom_call.1']
    #allocation7 [shape = 'u8[4096]{0}', space=vmem, size = 0x1000, scoped, tag = 'output window, operand 0, single buffered']
    %7 = vsyncpa [#allocation3], 0
    %8 = vsyncpa [#allocation6], 0
    %9 = vsyncpa [#allocation4], 0
    // Predicated region
    $region2: #{tpu_custom_call.1} parent=1 // pred_check
      _
    $region3: #{tpu_custom_call.1} parent=1 // pred_check_branch
      %11 = sbr.rel (0) target = $region5
    $region4: #{tpu_custom_call.1} parent=1 // pred_region
      %s12 = sadd.s32 0, 0
      %s13 = smul.u32 4, %s12
      %s15 = ssub.s32 512, 512
      %16 = vsyncadd [#allocation3], %s15
      %s17 = smul.addr %s13, 128
      %s18 = scalar_lea.hbm %s0, %s17
      %s19 = sshll.u32 [#allocation2], 4
      %s20 = int_to_ptr.vmem [resolvable:$true] %s19
      %25 = dma.hbm_to_vmem [thread:$0]  %s18, 512, %s20, [#allocation3], 128, 128, 8
    $region5: #{tpu_custom_call.1} parent=1 // pred_fallthru
      _
    // Predicated region
    $region6: #{tpu_custom_call.1} parent=1 // pred_check
      _
    $region7: #{tpu_custom_call.1} parent=1 // pred_check_branch
      %27 = sbr.rel (0) target = $region9
    $region8: #{tpu_custom_call.1} parent=1 // pred_region
      %s28 = sadd.s32 0, 0
      %s29 = smul.u32 4, %s28
      %s31 = ssub.s32 512, 512
      %32 = vsyncadd [#allocation6], %s31
      %s33 = smul.addr %s29, 128
      %s34 = scalar_lea.hbm %s1, %s33
      %s35 = sshll.u32 [#allocation5], 4
      %s36 = int_to_ptr.vmem [resolvable:$true] %s35
      %41 = dma.hbm_to_vmem [thread:$0]  %s34, 512, %s36, [#allocation6], 128, 128, 8
    $region9: #{tpu_custom_call.1} parent=1 // pred_fallthru
      _
    // Predicated region
    $region10: #{tpu_custom_call.1} parent=1 // pred_check
      _
    $region11: #{tpu_custom_call.1} parent=1 // pred_check_branch
      %43 = sbr.rel (0) target = $region13
    $region12: #{tpu_custom_call.1} parent=1 // pred_region
      %44 = dma.done [#allocation3], 512
    $region13: #{tpu_custom_call.1} parent=1 // pred_fallthru
      _
    // Predicated region
    $region14: #{tpu_custom_call.1} parent=1 // pred_check
      _
    $region15: #{tpu_custom_call.1} parent=1 // pred_check_branch
      %46 = sbr.rel (0) target = $region17
    $region16: #{tpu_custom_call.1} parent=1 // pred_region
      %47 = dma.done [#allocation6], 512
    $region17: #{tpu_custom_call.1} parent=1 // pred_fallthru
      _
    %s48 = sadd.s32 0, 0
    %s49 = smul.u32 4, %s48
    %s50 = sadd.s32 0, 0
    %s51 = smul.u32 4, %s50
    %p52 = scmp.eq.s32.totalorder 0, 0
    // Predicated region
    $region18: #{tpu_custom_call.1} parent=1 // pred_check
      %p53 = pneg %p52
    $region19: #{tpu_custom_call.1} parent=1 // pred_check_branch
      %55 = sbr.rel (%p53) target = $region21
    $region20: #{tpu_custom_call.1} parent=1 // pred_region
      %56 = vst [vmem:[#allocation7] sm:$0xff] 0.0
    $region21: #{tpu_custom_call.1} parent=1 // pred_fallthru
      _
    %v57 = vld [vmem:[#allocation2] sm:$0xff]
    %v58 = vld [vmem:[#allocation2 + $0x8] sm:$0xff]
    %v59 = vld [vmem:[#allocation2 + $0x10] sm:$0xff]
    %v60 = vld [vmem:[#allocation2 + $0x18] sm:$0xff]
    %v61 = vld [vmem:[#allocation5] sm:$0xff]
    %v62 = vld [vmem:[#allocation5 + $0x8] sm:$0xff]
    %v63 = vld [vmem:[#allocation5 + $0x10] sm:$0xff]
    %v64 = vld [vmem:[#allocation5 + $0x18] sm:$0xff]
    %v65 = vsub.f32 %v57, %v61
    %v66 = vsub.f32 %v58, %v62
    %v67 = vsub.f32 %v59, %v63
    %v68 = vsub.f32 %v60, %v64
    %v69 = vand.u32 2147483647, %v65
    %v70 = vand.u32 2147483647, %v66
    %v71 = vand.u32 2147483647, %v67
    %v72 = vand.u32 2147483647, %v68
    %v73 = vld [vmem:[#allocation7] sm:$0xff]
    %v74 = vadd.f32 %v69, %v70
    %v75 = vadd.f32 %v74, %v71
    %v76 = vadd.f32 %v75, %v72
    %v77 = vadd.f32 %v73, %v76
    %78 = vst [vmem:[#allocation7] sm:$0xff] %v77
    // Predicated region
    $region22: #{tpu_custom_call.1} parent=1 // pred_check
      _
    $region23: #{tpu_custom_call.1} parent=1 // pred_check_branch
      %80 = sbr.rel (0) target = $region25
    $region24: #{tpu_custom_call.1} parent=1 // pred_region
      %s82 = ssub.s32 128, 128
      %83 = vsyncadd [#allocation4], %s82
      %s85 = sshll.u32 [#allocation7], 4
      %s86 = int_to_ptr.vmem [resolvable:$true] %s85
      %88 = dma.vmem_to_hbm [thread:$0]  %s86, 128, %s2, [#allocation4]
    $region25: #{tpu_custom_call.1} parent=1 // pred_fallthru
      _
    // Predicated region
    $region26: #{tpu_custom_call.1} parent=1 // pred_check
      _
    $region27: #{tpu_custom_call.1} parent=1 // pred_check_branch
      %90 = sbr.rel (0) target = $region29
    $region28: #{tpu_custom_call.1} parent=1 // pred_region
      %91 = dma.done [#allocation4], 128
    $region29: #{tpu_custom_call.1} parent=1 // pred_fallthru
      _
    %92 = vsyncpa [#allocation3], 1
    %93 = vsyncpa [#allocation6], 1
    %94 = vsyncpa [#allocation4], 1

</llo_original>
